<compile_context>
chip_gen: v5e
topology: v5e:2x2
jax: 0.10.0
libtpu: 0.0.40
codegen_flags: <defaults>
</compile_context>

<pallas_src>
import math
import functools

import numpy as np
import jax
import jax.numpy as jnp
from jax import lax
from jax.experimental import pallas as pl
from jax.experimental.pallas import tpu as pltpu


# ----------------------------------------------------------------------------
# helpers
# ----------------------------------------------------------------------------
def _pick_tile(n, candidates=(128, 64, 32, 16, 8)):
    for c in candidates:
        if n % c == 0:
            return c
    return n


@functools.lru_cache(maxsize=None)
def _skew_mode(tq, lk):
    """Pick the in-kernel skew implementation for a (tq, lk) tile.

    We need  srel[ti, tj] = g[ti, tj + (tq-1-ti)]  on a (tq, tq+lk) block.
    Probe pltpu.roll's strided-rotate semantics on the exact shape; if some
    (shift, stride) pair reproduces the skew bit-exactly we use the single-pass
    XLU rotate, otherwise we fall back to per-row static slices via scratch.
    """
    w = tq + lk
    g = np.arange(tq * w, dtype=np.float32).reshape(tq, w)
    want = np.stack([g[ti, tq - 1 - ti: tq - 1 - ti + lk] for ti in range(tq)])
    candidates = [(lk + 1, 1), (tq - 1, 1), (tq - 1, w - 1),
                  (lk + 1, w - 1), (tq - 1, -1), (lk + 1, -1)]
    for shift, stride in candidates:
        try:
            def kern(g_ref, o_ref, _shift=shift, _stride=stride):
                rolled = pltpu.roll(g_ref[...], _shift, 1,
                                    stride=_stride, stride_axis=0)
                o_ref[...] = rolled[:, :lk]

            got = pl.pallas_call(
                kern, out_shape=jax.ShapeDtypeStruct((tq, lk), jnp.float32)
            )(jnp.asarray(g))
            got = np.asarray(jax.block_until_ready(got))
        except Exception:
            continue
        if np.array_equal(got, want):
            return ("roll", shift, stride)
    return ("rows", 0, 0)


# ----------------------------------------------------------------------------
# Fused linear kernel:  y = x @ W^T + b, split into n_out column groups
# ----------------------------------------------------------------------------
def _linear_kernel(x_ref, wt_ref, b_ref, *out_refs, d_out, compute_dtype):
    x = x_ref[...].astype(compute_dtype)
    wt = wt_ref[...].astype(compute_dtype)
    y = jnp.dot(x, wt, preferred_element_type=jnp.float32) + b_ref[...]
    for i, o in enumerate(out_refs):
        o[...] = y[:, i * d_out:(i + 1) * d_out].astype(o.dtype)


def linear_pallas(x2d, w, b, *, n_out=1, compute_dtype=jnp.float32):
    """x2d: (rows, K); w: (N, K) torch-Linear layout; b: (N,).  Returns n_out
    arrays of shape (rows, N // n_out) (tuple)."""
    rows, K = x2d.shape
    N = w.shape[0]
    assert N % n_out == 0
    d_out = N // n_out
    wt = jnp.transpose(w)                        # (K, N), one-time small copy
    b2 = b.reshape(1, N).astype(jnp.float32)
    tm = _pick_tile(rows, (512, 256, 128, 64, 32, 16, 8))   # large row tiles
    grid = (rows // tm,)

    kern = functools.partial(_linear_kernel, d_out=d_out,
                             compute_dtype=compute_dtype)
    out_shape = tuple(jax.ShapeDtypeStruct((rows, d_out), x2d.dtype)
                      for _ in range(n_out))
    out_specs = tuple(pl.BlockSpec((tm, d_out), lambda i: (i, 0))
                      for _ in range(n_out))
    return pl.pallas_call(
        kern,
        out_shape=out_shape,
        grid_spec=pltpu.PrefetchScalarGridSpec(
            num_scalar_prefetch=0,
            grid=grid,
            in_specs=[pl.BlockSpec((tm, K), lambda i: (i, 0)),
                      pl.BlockSpec((K, N), lambda i: (0, 0)),     # resident
                      pl.BlockSpec((1, N), lambda i: (0, 0))],
            out_specs=out_specs),
        compiler_params=pltpu.CompilerParams(
            dimension_semantics=("parallel",),
            vmem_limit_bytes=48 * 1024 * 1024),
    )(x2d, wt, b2)


# ----------------------------------------------------------------------------
# Fused relative attention kernel: per (batch, q-tile), all heads unrolled.
#   logits = q_s @ k^T + skew(q_s @ E_window^T) (+ mask bias); softmax; @ v
# ----------------------------------------------------------------------------
def _attn_kernel(*refs, nheads, dh, tq, lk, wwin, lq, scale, has_mask,
                 skew_mode, compute_dtype):
    q_ref, k_ref, v_ref, e_ref = refs[0], refs[1], refs[2], refs[3]
    idx = 4
    mb_ref = None
    if has_mask:
        mb_ref = refs[idx]
        idx += 1
    out_ref, attw_ref = refs[idx], refs[idx + 1]
    srel_scr = refs[idx + 2] if skew_mode[0] == "rows" else None

    qt = pl.program_id(1)
    # window of (zero-padded) relative embeddings needed by this q tile
    base = pl.multiple_of(lq - (qt + 1) * tq, tq)
    e_win = e_ref[pl.ds(base, wwin), :].astype(compute_dtype)   # (wwin, dh)

    # 1/sqrt(dh) folded into q once (O(tq*d) instead of O(tq*lk))
    q_all = q_ref[0].astype(jnp.float32) * jnp.float32(scale)   # (tq, d)
    k_all = k_ref[0]                                            # (lk, d)
    v_all = v_ref[0]                                            # (lk, d)
    mbias = mb_ref[...] if has_mask else None                   # (tq, lk)

    head_ctx = []
    for hh in range(nheads):                                    # static unroll
        sl = slice(hh * dh, (hh + 1) * dh)
        q_h = q_all[:, sl].astype(compute_dtype)                # (tq, dh)
        k_h = k_all[:, sl].astype(compute_dtype)                # (lk, dh)
        v_h = v_all[:, sl].astype(compute_dtype)                # (lk, dh)

        # relative-position scores: g[ti, c] = q_h[ti] . e_win[c]
        g = lax.dot_general(q_h, e_win, (((1,), (1,)), ((), ())),
                            preferred_element_type=jnp.float32)  # (tq, wwin)
        # skew: srel[ti, tj] = g[ti, tj + tq-1-ti]
        if skew_mode[0] == "roll":
            _, shift, stride = skew_mode
            srel = pltpu.roll(g, shift, 1, stride=stride, stride_axis=0)[:, :lk]
        else:
            for ti in range(tq):
                s = tq - 1 - ti
                srel_scr[ti:ti + 1, :] = g[ti:ti + 1, s:s + lk]
            srel = srel_scr[...]

        qkt = lax.dot_general(q_h, k_h, (((1,), (1,)), ((), ())),
                              preferred_element_type=jnp.float32)  # (tq, lk)
        logits = qkt + srel
        if has_mask:
            logits = logits + mbias

        # softmax (f32 stats)
        mx = jnp.max(logits, axis=-1, keepdims=True)
        p = jnp.exp(logits - mx)
        denom = jnp.sum(p, axis=-1, keepdims=True)
        attw = p * pl.reciprocal(denom, approx=False)
        attw_ref[0, hh] = attw.astype(attw_ref.dtype)

        head_ctx.append(
            lax.dot_general(attw.astype(compute_dtype), v_h,
                            (((1,), (0,)), ((), ())),
                            preferred_element_type=jnp.float32))  # (tq, dh)

    # one lane-dense (tq, d) store for all heads
    out_ref[0] = jnp.concatenate(head_ctx, axis=-1).astype(out_ref.dtype)


def attention_pallas(q, k, v, e_pad, mbias2d, *, nheads, dh, scale,
                     compute_dtype=jnp.float32):
    """q,k,v: (B, L, d) with heads packed on the last dim; e_pad: zero-padded
    relative embeddings (>= Lq+Lk rows, dh cols); mbias2d: (Lq, Lk) or None."""
    B, Lq, d = q.shape
    Lk = k.shape[1]
    tq = _pick_tile(Lq)
    n_qt = Lq // tq
    wwin = tq + Lk
    skew_mode = _skew_mode(tq, Lk)
    has_mask = mbias2d is not None

    kern = functools.partial(
        _attn_kernel, nheads=nheads, dh=dh, tq=tq, lk=Lk, wwin=wwin, lq=Lq,
        scale=scale, has_mask=has_mask, skew_mode=skew_mode,
        compute_dtype=compute_dtype)

    in_specs = [
        pl.BlockSpec((1, tq, d), lambda b, qt: (b, qt, 0)),     # q tile
        pl.BlockSpec((1, Lk, d), lambda b, qt: (b, 0, 0)),      # K resident / batch
        pl.BlockSpec((1, Lk, d), lambda b, qt: (b, 0, 0)),      # V resident / batch
        pl.BlockSpec(e_pad.shape, lambda b, qt: (0, 0)),        # E resident
    ]
    operands = [q, k, v, e_pad]
    if has_mask:
        in_specs.append(pl.BlockSpec((tq, Lk), lambda b, qt: (qt, 0)))
        operands.append(mbias2d)

    scratch_shapes = []
    if skew_mode[0] == "rows":
        scratch_shapes.append(pltpu.VMEM((tq, Lk), jnp.float32))

    out_shape = (jax.ShapeDtypeStruct((B, Lq, d), q.dtype),
                 jax.ShapeDtypeStruct((B, nheads, Lq, Lk), jnp.float32))
    out_specs = (pl.BlockSpec((1, tq, d), lambda b, qt: (b, qt, 0)),
                 pl.BlockSpec((1, nheads, tq, Lk), lambda b, qt: (b, 0, qt, 0)))

    return pl.pallas_call(
        kern,
        out_shape=out_shape,
        grid_spec=pltpu.PrefetchScalarGridSpec(
            num_scalar_prefetch=0,
            grid=(B, n_qt),
            in_specs=in_specs,
            out_specs=out_specs,
            scratch_shapes=scratch_shapes),
        compiler_params=pltpu.CompilerParams(
            dimension_semantics=("parallel", "parallel"),
            # stays well below v7x's 64 MiB physical VMEM with double buffering
            vmem_limit_bytes=48 * 1024 * 1024),
    )(*operands)


# ----------------------------------------------------------------------------
# Module wrapper
# ----------------------------------------------------------------------------
class RelativeGlobalAttentionPallas:
    def __init__(self, h=4, d=256, add_emb=False, max_seq=2048, key=None,
                 compute_dtype=jnp.float32):
        assert d % h == 0
        self.h, self.d, self.dh, self.max_seq = h, d, d // h, max_seq
        self.additional = add_emb
        self.compute_dtype = compute_dtype   # jnp.bfloat16 for faster MXU on v6e/v7x
        if key is None:
            key = jax.random.PRNGKey(0)
        ks = jax.random.split(key, 9)
        scale = 1.0 / math.sqrt(d)
        init = lambda k, shp, s: s * jax.random.normal(k, shp, jnp.float32)
        self.params = {
            "Wq_w": init(ks[0], (d, d), scale), "Wq_b": init(ks[1], (d,), scale),
            "Wk_w": init(ks[2], (d, d), scale), "Wk_b": init(ks[3], (d,), scale),
            "Wv_w": init(ks[4], (d, d), scale), "Wv_b": init(ks[5], (d,), scale),
            "fc_w": init(ks[6], (d, d), scale), "fc_b": init(ks[7], (d,), scale),
            "E":    jax.random.normal(ks[8], (max_seq, self.dh), jnp.float32),
        }

    def __call__(self, inputs, mask=None):
        p = self.params
        h, d, dh = self.h, self.d, self.dh
        q_in, k_in, v_in = inputs
        B, Lq, _ = q_in.shape
        Lk = k_in.shape[1]
        if Lq > self.max_seq:
            # TODO(synk): reference skew breaks when len_q > max_seq (M < L).
            raise NotImplementedError("len_q > max_seq is not supported")
        if Lk > Lq:
            # TODO(synk): reference _skewing pads the *batch* dim here (latent
            # bug in the PyTorch module); not reproduced.
            raise NotImplementedError("len_k > len_q is not supported")

        # ---- fused Q/K/V projection (single matmul when inputs are shared) ----
        if (q_in is k_in) and (k_in is v_in):
            w_qkv = jnp.concatenate([p["Wq_w"], p["Wk_w"], p["Wv_w"]], axis=0)
            b_qkv = jnp.concatenate([p["Wq_b"], p["Wk_b"], p["Wv_b"]], axis=0)
            q2, k2, v2 = linear_pallas(q_in.reshape(B * Lq, d), w_qkv, b_qkv,
                                       n_out=3, compute_dtype=self.compute_dtype)
        else:
            (q2,) = linear_pallas(q_in.reshape(B * Lq, d), p["Wq_w"], p["Wq_b"],
                                  compute_dtype=self.compute_dtype)
            (k2,) = linear_pallas(k_in.reshape(B * Lk, d), p["Wk_w"], p["Wk_b"],
                                  compute_dtype=self.compute_dtype)
            (v2,) = linear_pallas(v_in.reshape(B * Lk, d), p["Wv_w"], p["Wv_b"],
                                  compute_dtype=self.compute_dtype)
        # heads stay packed on the last dim -> no HBM transposes
        q3 = q2.reshape(B, Lq, d)
        k3 = k2.reshape(B, Lk, d)
        v3 = v2.reshape(B, Lk, d)

        # relative embeddings: slice last Lq rows and zero-pad; the zero rows
        # implement the qe-masking / "upper-triangle -> 0" part of the skew.
        start = max(0, self.max_seq - Lq)
        e_sel = p["E"][start:, :]                              # (Lq, dh)
        rows = Lq + Lk
        rows8 = ((rows + 7) // 8) * 8
        e_pad = jnp.pad(e_sel, ((0, rows8 - Lq), (0, 0)))

        # additive mask bias kept at (Lq, Lk) -- no (B,H,L,L) broadcast in HBM
        mbias2d = None
        if mask is not None:
            m = jnp.asarray(mask)
            while m.ndim > 2:
                if m.shape[0] != 1:
                    # TODO(synk): batch/head-dependent masks not supported.
                    raise NotImplementedError("batch/head-dependent masks unsupported")
                m = jnp.squeeze(m, axis=0)
            mbias2d = (jnp.broadcast_to(m, (Lq, Lk)).astype(jnp.float32)
                       * jnp.float32(-1.0e9))

        ctx, attw = attention_pallas(q3, k3, v3, e_pad, mbias2d,
                                     nheads=h, dh=dh,
                                     scale=1.0 / math.sqrt(dh),
                                     compute_dtype=self.compute_dtype)

        (out2d,) = linear_pallas(ctx.reshape(B * Lq, d), p["fc_w"], p["fc_b"],
                                 compute_dtype=self.compute_dtype)
        return out2d.reshape(B, Lq, d), attw


# ----------------------------------------------------------------------------
# Pure-JAX reference (mirrors the PyTorch forward) for correctness checks
# ----------------------------------------------------------------------------
def _skew_ref(qe, len_k, len_q):
    B, H, L, M = qe.shape
    padded = jnp.pad(qe, ((0, 0), (0, 0), (0, 0), (1, 0)))
    reshaped = padded.reshape(B, H, M + 1, L)
    srel = reshaped[:, :, 1:, :]
    if len_k > len_q:
        srel = jnp.pad(srel, ((0, len_k - len_q), (0, 0), (0, 0), (0, 0)))
    elif len_k < len_q:
        srel = srel[:, :, :, :len_k]
    return srel


def ref_forward(params, h, d, max_seq, inputs, mask=None):
    dh = d // h
    lin = lambda x, w, b: x @ w.T + b
    q_in, k_in, v_in = inputs
    q = lin(q_in, params["Wq_w"], params["Wq_b"])
    k = lin(k_in, params["Wk_w"], params["Wk_b"])
    v = lin(v_in, params["Wv_w"], params["Wv_b"])
    B, Lq, _ = q.shape
    Lk = k.shape[1]
    q = q.reshape(B, Lq, h, dh).transpose(0, 2, 1, 3)
    k = k.reshape(B, Lk, h, dh).transpose(0, 2, 1, 3)
    v = v.reshape(B, Lk, h, dh).transpose(0, 2, 1, 3)
    start = max(0, max_seq - Lq)
    E = params["E"][start:, :]
    QE = jnp.einsum("bhld,md->bhlm", q, E)
    M, L = QE.shape[-1], QE.shape[-2]
    lengths = jnp.arange(M - 1, M - L - 1, -1)
    seq_mask = jnp.arange(M)[None, :] < lengths[:, None]
    QE = (~seq_mask).astype(QE.dtype) * QE
    Srel = _skew_ref(QE, Lk, Lq)
    QKt = jnp.einsum("bhld,bhmd->bhlm", q, k)
    logits = (QKt + Srel) / math.sqrt(dh)
    if mask is not None:
        logits = logits + jnp.asarray(mask).astype(jnp.float32) * jnp.float32(-1.0e9)
    attw = jax.nn.softmax(logits, axis=-1)
    attn = jnp.einsum("bhlm,bhmd->bhld", attw, v)
    out = attn.transpose(0, 2, 1, 3).reshape(B, Lq, d)
    out = lin(out, params["fc_w"], params["fc_b"])
    return out, attw


# ----------------------------------------------------------------------------
if __name__ == "__main__":
    def check(mod, inputs, mask, tag):
        out, attw = mod(inputs, mask=mask)
        out = jax.block_until_ready(out)
        attw = jax.block_until_ready(attw)
        out_ref, attw_ref = ref_forward(mod.params, mod.h, mod.d, mod.max_seq,
                                        inputs, mask=mask)
        assert out.shape == out_ref.shape, tag
        assert attw.shape == attw_ref.shape, tag
        assert jnp.allclose(out, out_ref, atol=1e-4, rtol=1e-4), tag
        assert jnp.allclose(attw, attw_ref, atol=1e-4, rtol=1e-4), tag

    # case 1: self-attention, no mask (batch=2, seq=8, d_model=32, heads=4)
    B, L, D, H, MAX_SEQ = 2, 8, 32, 4, 16
    mod = RelativeGlobalAttentionPallas(h=H, d=D, max_seq=MAX_SEQ,
                                        key=jax.random.PRNGKey(42))
    x = jax.random.normal(jax.random.PRNGKey(0), (B, L, D), jnp.float32)
    check(mod, [x, x, x], None, "no-mask")

    # case 2: causal mask broadcast over batch & heads
    causal = (jnp.arange(L)[None, :] > jnp.arange(L)[:, None]).astype(jnp.int32)
    check(mod, [x, x, x], causal.reshape(1, 1, L, L), "causal-mask")

    # case 3: multi q-tile path (Lq = 24 -> 3 tiles of 8)
    B2, L2, MAX2 = 1, 24, 32
    mod2 = RelativeGlobalAttentionPallas(h=H, d=D, max_seq=MAX2,
                                         key=jax.random.PRNGKey(7))
    x2 = jax.random.normal(jax.random.PRNGKey(1), (B2, L2, D), jnp.float32)
    check(mod2, [x2, x2, x2], None, "multi-tile")

    print("KERNEL_OK")
</pallas_src>

<mosaic_0001>
module attributes {stable_mosaic.version = 11 : i64} {
  func.func @_linear_kernel(%arg0: i32, %arg1: memref<16x32xf32, #tpu.memory_space<vmem>>, %arg2: memref<32x96xf32, #tpu.memory_space<vmem>>, %arg3: memref<1x96xf32, #tpu.memory_space<vmem>>, %arg4: memref<16x32xf32, #tpu.memory_space<vmem>>, %arg5: memref<16x32xf32, #tpu.memory_space<vmem>>, %arg6: memref<16x32xf32, #tpu.memory_space<vmem>>) attributes {dimension_semantics = [#tpu.dimension_semantics<parallel>], iteration_bounds = array<i64: 1>, scalar_prefetch = 0 : i64, scratch_operands = 0 : i64, tpu.core_type = #tpu.core_type<tc>, window_params = [{transform_indices = @transform_0, window_bounds = array<i64: 16, 32>}, {pipeline_mode = #tpu.pipeline_mode<synchronous>, transform_indices = @transform_1, window_bounds = array<i64: 32, 96>}, {pipeline_mode = #tpu.pipeline_mode<synchronous>, transform_indices = @transform_2, window_bounds = array<i64: 1, 96>}, {transform_indices = @transform_3, window_bounds = array<i64: 16, 32>}, {transform_indices = @transform_4, window_bounds = array<i64: 16, 32>}, {transform_indices = @transform_5, window_bounds = array<i64: 16, 32>}]} {
    %c0 = arith.constant 0 : index
    %c0_0 = arith.constant 0 : index
    %0 = vector.load %arg1[%c0, %c0_0] : memref<16x32xf32, #tpu.memory_space<vmem>>, vector<16x32xf32>
    %c0_1 = arith.constant 0 : index
    %c0_2 = arith.constant 0 : index
    %1 = vector.load %arg2[%c0_1, %c0_2] : memref<32x96xf32, #tpu.memory_space<vmem>>, vector<32x96xf32>
    %cst = arith.constant dense<0.000000e+00> : vector<16x96xf32>
    %2 = tpu.matmul %0, %1, %cst {dimension_numbers = #tpu.dot_dimension_numbers<[1], [0], [0], [1], [0, 0, 1, 1], [], []>} : vector<16x32xf32>, vector<32x96xf32>, vector<16x96xf32> -> vector<16x96xf32>
    %c0_3 = arith.constant 0 : index
    %c0_4 = arith.constant 0 : index
    %3 = vector.load %arg3[%c0_3, %c0_4] : memref<1x96xf32, #tpu.memory_space<vmem>>, vector<1x96xf32>
    %4 = vector.broadcast %3 : vector<1x96xf32> to vector<16x96xf32>
    %5 = arith.addf %2, %4 : vector<16x96xf32>
    %6 = vector.extract_strided_slice %5 {offsets = [0, 0], sizes = [16, 32], strides = [1, 1]} : vector<16x96xf32> to vector<16x32xf32>
    %c0_5 = arith.constant 0 : index
    %c0_6 = arith.constant 0 : index
    %7 = vector.load %arg4[%c0_5, %c0_6] : memref<16x32xf32, #tpu.memory_space<vmem>>, vector<16x32xf32>
    tpu.vector_store %arg4[%c0_5, %c0_6], %6 {strides = array<i32>} : memref<16x32xf32, #tpu.memory_space<vmem>>, vector<16x32xf32>,
    %8 = vector.extract_strided_slice %5 {offsets = [0, 32], sizes = [16, 32], strides = [1, 1]} : vector<16x96xf32> to vector<16x32xf32>
    %c0_7 = arith.constant 0 : index
    %c0_8 = arith.constant 0 : index
    %9 = vector.load %arg5[%c0_7, %c0_8] : memref<16x32xf32, #tpu.memory_space<vmem>>, vector<16x32xf32>
    tpu.vector_store %arg5[%c0_7, %c0_8], %8 {strides = array<i32>} : memref<16x32xf32, #tpu.memory_space<vmem>>, vector<16x32xf32>,
    %10 = vector.extract_strided_slice %5 {offsets = [0, 64], sizes = [16, 32], strides = [1, 1]} : vector<16x96xf32> to vector<16x32xf32>
    %c0_9 = arith.constant 0 : index
    %c0_10 = arith.constant 0 : index
    %11 = vector.load %arg6[%c0_9, %c0_10] : memref<16x32xf32, #tpu.memory_space<vmem>>, vector<16x32xf32>
    tpu.vector_store %arg6[%c0_9, %c0_10], %10 {strides = array<i32>} : memref<16x32xf32, #tpu.memory_space<vmem>>, vector<16x32xf32>,
    return
  }
  func.func @transform_0(%arg0: i32) -> (i32, i32) {
    %c0_i32 = arith.constant 0 : i32
    %c0_i32_0 = arith.constant 0 : i32
    return %arg0, %c0_i32 : i32, i32
  }
  func.func @transform_1(%arg0: i32) -> (i32, i32) {
    %c0_i32 = arith.constant 0 : i32
    %c0_i32_0 = arith.constant 0 : i32
    %c0_i32_1 = arith.constant 0 : i32
    return %c0_i32, %c0_i32_0 : i32, i32
  }
  func.func @transform_2(%arg0: i32) -> (i32, i32) {
    %c0_i32 = arith.constant 0 : i32
    %c0_i32_0 = arith.constant 0 : i32
    %c0_i32_1 = arith.constant 0 : i32
    return %c0_i32, %c0_i32_0 : i32, i32
  }
  func.func @transform_3(%arg0: i32) -> (i32, i32) {
    %c0_i32 = arith.constant 0 : i32
    %c0_i32_0 = arith.constant 0 : i32
    return %arg0, %c0_i32 : i32, i32
  }
  func.func @transform_4(%arg0: i32) -> (i32, i32) {
    %c0_i32 = arith.constant 0 : i32
    %c0_i32_0 = arith.constant 0 : i32
    return %arg0, %c0_i32 : i32, i32
  }
  func.func @transform_5(%arg0: i32) -> (i32, i32) {
    %c0_i32 = arith.constant 0 : i32
    %c0_i32_0 = arith.constant 0 : i32
    return %arg0, %c0_i32 : i32, i32
  }
}

</mosaic_0001>

<llo_original>
// kernel: tpu_custom_call.1
$region0: #{tpu_custom_call.1}
  #allocation0 [shape = 'u32[]', space=smem, size = 0x4, offset = 0x4, fixed_abs, tag = 'smem constant byte address 0x4 - core index']
  #allocation1 [shape = 'u32[72,128]{1,0:T(1,128)}', space=vmem, size = 0x9000, scoped, tag = 'internal scratch']
  %s0 = inlined_call_operand.hbm [shape: f32[16,32], index: 0, kind: input, shape index: {}]
  %s1 = inlined_call_operand.hbm [shape: f32[32,96], index: 1, kind: input, shape index: {}]
  %s2 = inlined_call_operand.vmem [shape: f32[1,96], index: 2, kind: input, shape index: {}]
  %s3 = inlined_call_operand.hbm [shape: f32[16,32], index: 3, kind: output, shape index: {0}]
  %s4 = inlined_call_operand.hbm [shape: f32[16,32], index: 4, kind: output, shape index: {1}]
  %s5 = inlined_call_operand.hbm [shape: f32[16,32], index: 5, kind: output, shape index: {2}]
  %6 = xla_tuple %s3, %s4, %s5
  %s7 = sld [smem:[#allocation0]]
  $region46: #{tpu_custom_call.1} parent=0
    _
  %s9 = ssub.s32 1, %s7
  %s10 = scalar_select 0, %s9, %s7
  $region1: #{tpu_custom_call.1} parent=0
    #allocation2 [shape = 'u8[8192]{0}', space=vmem, size = 0x2000, scoped, tag = 'input window, operand 0, single buffered']
    #allocation3 [shape = 's32[1]{0}', space=sflag, size = 0x4, scoped, tag = 'scoped memory for tpu_custom_call.1']
    #allocation4 [shape = 's32[1]{0}', space=sflag, size = 0x4, scoped, tag = 'scoped memory for tpu_custom_call.1']
    #allocation5 [shape = 'u8[16384]{0}', space=vmem, size = 0x4000, scoped, tag = 'input window, operand 1, single buffered']
    #allocation6 [shape = 's32[1]{0}', space=sflag, size = 0x4, scoped, tag = 'scoped memory for tpu_custom_call.1']
    #allocation7 [shape = 'u8[8192]{0}', space=vmem, size = 0x2000, scoped, tag = 'output window, operand 0, single buffered']
    #allocation8 [shape = 'u8[8192]{0}', space=vmem, size = 0x2000, scoped, tag = 'output window, operand 1, single buffered']
    #allocation9 [shape = 's32[1]{0}', space=sflag, size = 0x4, scoped, tag = 'scoped memory for tpu_custom_call.1']
    #allocation10 [shape = 'u8[8192]{0}', space=vmem, size = 0x2000, scoped, tag = 'output window, operand 2, single buffered']
    %11 = vsyncpa [#allocation3], 0
    %12 = vsyncpa [#allocation6], 0
    %13 = vsyncpa [#allocation4], 0
    %14 = vsyncpa [#allocation9], 0
    // Predicated region
    $region2: #{tpu_custom_call.1} parent=1 // pred_check
      _
    $region3: #{tpu_custom_call.1} parent=1 // pred_check_branch
      %16 = sbr.rel (0) target = $region5
    $region4: #{tpu_custom_call.1} parent=1 // pred_region
      %18 = vsyncadd [#allocation3], 0
      %s19 = sshll.u32 %s0, 4
      %s20 = int_to_ptr.hbm [resolvable:$true] %s19
      %s21 = sshll.u32 [#allocation2], 4
      %s22 = int_to_ptr.vmem [resolvable:$true] %s21
      %27 = dma.hbm_to_vmem [thread:$0]  %s20, 256, %s22, [#allocation3], 128, 128, 8
    $region5: #{tpu_custom_call.1} parent=1 // pred_fallthru
      _
    // Predicated region
    $region6: #{tpu_custom_call.1} parent=1 // pred_check
      _
    $region7: #{tpu_custom_call.1} parent=1 // pred_check_branch
      %29 = sbr.rel (0) target = $region9
    $region8: #{tpu_custom_call.1} parent=1 // pred_region
      %31 = vsyncadd [#allocation6], 0
      %s32 = sshll.u32 %s1, 4
      %s33 = int_to_ptr.hbm [resolvable:$true] %s32
      %s34 = sshll.u32 [#allocation5], 4
      %s35 = int_to_ptr.vmem [resolvable:$true] %s34
      %40 = dma.hbm_to_vmem [thread:$0]  %s33, 512, %s35, [#allocation6], 128, 128, 8
    $region9: #{tpu_custom_call.1} parent=1 // pred_fallthru
      _
    // Predicated region
    $region10: #{tpu_custom_call.1} parent=1 // pred_check
      _
    $region11: #{tpu_custom_call.1} parent=1 // pred_check_branch
      %42 = sbr.rel (0) target = $region13
    $region12: #{tpu_custom_call.1} parent=1 // pred_region
      _
    $region13: #{tpu_custom_call.1} parent=1 // pred_fallthru
      _
    // Predicated region
    $region14: #{tpu_custom_call.1} parent=1 // pred_check
      _
    $region15: #{tpu_custom_call.1} parent=1 // pred_check_branch
      %44 = sbr.rel (0) target = $region17
    $region16: #{tpu_custom_call.1} parent=1 // pred_region
      %46 = dma.done [#allocation3], 256
    $region17: #{tpu_custom_call.1} parent=1 // pred_fallthru
      _
    // Predicated region
    $region18: #{tpu_custom_call.1} parent=1 // pred_check
      _
    $region19: #{tpu_custom_call.1} parent=1 // pred_check_branch
      %48 = sbr.rel (0) target = $region21
    $region20: #{tpu_custom_call.1} parent=1 // pred_region
      %50 = dma.done [#allocation6], 512
    $region21: #{tpu_custom_call.1} parent=1 // pred_fallthru
      _
    %v51 = vld [vmem:[#allocation2] sm:$0xff]
    %v52 = vld [vmem:[#allocation2 + $0x8] sm:$0xff]
    %v53 = vld [vmem:[#allocation5] sm:$0xff]
    %v54 = vld [vmem:[#allocation5 + $0x8] sm:$0xff]
    %v55 = vld [vmem:[#allocation5 + $0x10] sm:$0xff]
    %v56 = vld [vmem:[#allocation5 + $0x18] sm:$0xff]
    %v57 = vld [vmem:[%s2] sm:$0x1]
    %v59 = vperm.slane %v57, 0
    %vm61 = vcmask 261120
    %v63 = vsel %vm61, %v51, 0
    %v66 = vsel %vm61, %v52, 0
    %68 = vmatpush.msra.mxu0 0.0
    %69 = vmatpush.msra.mxu0 0.0
    %70 = vmatpush.msra.mxu0 0.0
    %71 = vmatpush.msra.mxu0 0.0
    %72 = vmatpush.msra.mxu0 0.0
    %73 = vmatpush.msra.mxu0 0.0
    %74 = vmatpush.msra.mxu0 0.0
    %75 = vmatpush.msra.mxu0 0.0
    %76 = vmatpush.msra.mxu0 0.0
    %77 = vmatpush.msra.mxu0 0.0
    %78 = vmatpush.msra.mxu0 0.0
    %79 = vmatpush.msra.mxu0 0.0
    %80 = vmatpush.msra.mxu0 %v56
    %81 = vmatpush.msra.mxu0 %v55
    %82 = vmatpush.msra.mxu0 %v54
    %83 = vmatpush.msra.mxu0 %v53
    %84 = vmatmul.f32.gmra.mxu0 %v63
    %v85 = vpop.f32.mrf.mxu0
    %v86 = vadd.f32 %v59, %v85
    %87 = vmatmul.f32.gmra.mxu0 %v66
    %v88 = vpop.f32.mrf.mxu0
    %v89 = vadd.f32 %v59, %v88
    %90 = vdwg.mxu0
    %91 = vst.msk [vmem:[#allocation7] sm:$0xff] %vm61, %v86
    %92 = vst.msk [vmem:[#allocation7 + $0x8] sm:$0xff] %vm61, %v89
    %95 = vrot.lane.b32.xlu0 %v86, 96
    %v96 = vpop.permute.xlu0 %95
    %97 = vrot.lane.b32.xlu0 %v89, 96
    %v98 = vpop.permute.xlu0 %97
    %101 = vst.msk [vmem:[#allocation8] sm:$0xff] %vm61, %v96
    %102 = vst.msk [vmem:[#allocation8 + $0x8] sm:$0xff] %vm61, %v98
    %103 = vrot.lane.b32.xlu0 %v86, 64
    %v104 = vpop.permute.xlu0 %103
    %105 = vrot.lane.b32.xlu0 %v89, 64
    %v106 = vpop.permute.xlu0 %105
    %109 = vst.msk [vmem:[#allocation10] sm:$0xff] %vm61, %v104
    %110 = vst.msk [vmem:[#allocation10 + $0x8] sm:$0xff] %vm61, %v106
    // Predicated region
    $region22: #{tpu_custom_call.1} parent=1 // pred_check
      _
    $region23: #{tpu_custom_call.1} parent=1 // pred_check_branch
      %112 = sbr.rel (0) target = $region25
    $region24: #{tpu_custom_call.1} parent=1 // pred_region
      %114 = vsyncadd [#allocation4], 0
      %s115 = sshll.u32 [#allocation7], 4
      %s116 = int_to_ptr.vmem [resolvable:$true] %s115
      %s117 = sshll.u32 %s3, 4
      %s118 = int_to_ptr.hbm [resolvable:$true] %s117
      %123 = dma.vmem_to_hbm [thread:$0]  %s116, 256, %s118, [#allocation4], 128, 128, 8
    $region25: #{tpu_custom_call.1} parent=1 // pred_fallthru
      _
    // Predicated region
    $region26: #{tpu_custom_call.1} parent=1 // pred_check
      _
    $region27: #{tpu_custom_call.1} parent=1 // pred_check_branch
      %125 = sbr.rel (0) target = $region29
    $region28: #{tpu_custom_call.1} parent=1 // pred_region
      %127 = vsyncadd [#allocation9], 0
      %s128 = sshll.u32 [#allocation8], 4
      %s129 = int_to_ptr.vmem [resolvable:$true] %s128
      %s130 = sshll.u32 %s4, 4
      %s131 = int_to_ptr.hbm [resolvable:$true] %s130
      %136 = dma.vmem_to_hbm [thread:$0]  %s129, 256, %s131, [#allocation9], 128, 128, 8
    $region29: #{tpu_custom_call.1} parent=1 // pred_fallthru
      _
    // Predicated region
    $region30: #{tpu_custom_call.1} parent=1 // pred_check
      _
    $region31: #{tpu_custom_call.1} parent=1 // pred_check_branch
      %138 = sbr.rel (0) target = $region33
    $region32: #{tpu_custom_call.1} parent=1 // pred_region
      %140 = vsyncadd [#allocation9], 0
      %s141 = sshll.u32 [#allocation10], 4
      %s142 = int_to_ptr.vmem [resolvable:$true] %s141
      %s143 = sshll.u32 %s5, 4
      %s144 = int_to_ptr.hbm [resolvable:$true] %s143
      %149 = dma.vmem_to_hbm [thread:$0]  %s142, 256, %s144, [#allocation9], 128, 128, 8
    $region33: #{tpu_custom_call.1} parent=1 // pred_fallthru
      _
    // Predicated region
    $region34: #{tpu_custom_call.1} parent=1 // pred_check
      _
    $region35: #{tpu_custom_call.1} parent=1 // pred_check_branch
      %151 = sbr.rel (0) target = $region37
    $region36: #{tpu_custom_call.1} parent=1 // pred_region
      %153 = dma.done [#allocation4], 256
    $region37: #{tpu_custom_call.1} parent=1 // pred_fallthru
      _
    // Predicated region
    $region38: #{tpu_custom_call.1} parent=1 // pred_check
      _
    $region39: #{tpu_custom_call.1} parent=1 // pred_check_branch
      %155 = sbr.rel (0) target = $region41
    $region40: #{tpu_custom_call.1} parent=1 // pred_region
      %157 = dma.done [#allocation9], 256
    $region41: #{tpu_custom_call.1} parent=1 // pred_fallthru
      _
    // Predicated region
    $region42: #{tpu_custom_call.1} parent=1 // pred_check
      _
    $region43: #{tpu_custom_call.1} parent=1 // pred_check_branch
      %159 = sbr.rel (0) target = $region45
    $region44: #{tpu_custom_call.1} parent=1 // pred_region
      %161 = dma.done [#allocation9], 256
    $region45: #{tpu_custom_call.1} parent=1 // pred_fallthru
      _
    %162 = vsyncpa [#allocation3], 1
    %163 = vsyncpa [#allocation6], 1
    %164 = vsyncpa [#allocation4], 1
    %165 = vsyncpa [#allocation9], 1

</llo_original>
